<compile_context>
chip_gen: v5e
topology: v5e:2x2
jax: 0.10.0
libtpu: 0.0.40
codegen_flags: <defaults>
</compile_context>

<pallas_src>
import numpy as np

import jax
import jax.numpy as jnp
from jax.experimental import pallas as pl
from jax.experimental.pallas import tpu as pltpu


def _band_weights(w_oihw, W):
    """OIHW (Cout, Cin, 3, 3) -> (3, W*Cin, W*Cout) block-banded matrices.

    Band kh maps a full padded image row (shifted by kh) to a full output row:
        out_row[h] = sum_kh  xpad_row[h + kh] @ band[kh].
    The 3 kw taps and the zero padding at the W boundary are encoded in the
    band structure, so no in-kernel window slicing is needed.
    """
    w = np.asarray(w_oihw, np.float32)          # (Cout, Cin, 3, 3)
    Co, Ci = w.shape[0], w.shape[1]
    band = np.zeros((3, W * Ci, W * Co), np.float32)
    for kh in range(3):
        for kw in range(3):
            blk = w[:, :, kh, kw].T             # (Cin, Cout)
            for wo in range(W):
                ws = wo + kw - 1                # source column for this tap
                if 0 <= ws < W:
                    band[kh, ws * Ci:(ws + 1) * Ci, wo * Co:(wo + 1) * Co] = blk
    return band


def _make_kernel(H, WC):
    def kernel(x_ref, w1_ref, b1_ref, w2_ref, b2_ref, out_ref, pad_ref):
        x = x_ref[...]                                      # (H, WC) f32, lane-dense

        # Zero only the two halo rows (the W-boundary zeros are folded into the
        # band weights).  Done every grid step so there is no cross-iteration
        # scratch state (safe under megacore parallel grid splitting).
        zrow = jnp.zeros((1, WC), jnp.bfloat16)
        pad_ref[0:1, :] = zrow
        pad_ref[H + 1:H + 2, :] = zrow

        # ---- conv1 (bn1 scale folded into the band weights) ----
        pad_ref[1:H + 1, :] = x.astype(jnp.bfloat16)
        acc = jnp.dot(pad_ref[0:H, :], w1_ref[0],
                      preferred_element_type=jnp.float32)
        acc += jnp.dot(pad_ref[1:H + 1, :], w1_ref[1],
                       preferred_element_type=jnp.float32)
        acc += jnp.dot(pad_ref[2:H + 2, :], w1_ref[2],
                       preferred_element_type=jnp.float32)

        # bn1 bias + relu, f32, lane-dense
        mid = jnp.maximum(acc + b1_ref[...], 0.0)

        # ---- conv2 (bn2 scale folded into the band weights) ----
        # Reuse the same padded scratch; halo rows are still zero.
        pad_ref[1:H + 1, :] = mid.astype(jnp.bfloat16)
        acc2 = jnp.dot(pad_ref[0:H, :], w2_ref[0],
                       preferred_element_type=jnp.float32)
        acc2 += jnp.dot(pad_ref[1:H + 1, :], w2_ref[1],
                        preferred_element_type=jnp.float32)
        acc2 += jnp.dot(pad_ref[2:H + 2, :], w2_ref[2],
                        preferred_element_type=jnp.float32)

        # bn2 bias + identity residual (exact f32, contiguous read) + relu; dense store
        out_ref[...] = jnp.maximum(acc2 + b2_ref[...] + x, 0.0)

    return kernel


def prepare_params(w1_oihw, scale1, bias1, w2_oihw, scale2, bias2, W):
    """One-time host-side prep: BN scale folded into banded bf16 conv weights,
    BN bias lane-tiled to (1, W*C)."""
    w1s = np.asarray(w1_oihw, np.float32) * np.asarray(scale1, np.float32)[:, None, None, None]
    w2s = np.asarray(w2_oihw, np.float32) * np.asarray(scale2, np.float32)[:, None, None, None]
    wb1 = jnp.asarray(_band_weights(w1s, W), jnp.bfloat16)
    wb2 = jnp.asarray(_band_weights(w2s, W), jnp.bfloat16)
    b1 = jnp.tile(jnp.asarray(bias1, jnp.float32), W).reshape(1, -1)
    b2 = jnp.tile(jnp.asarray(bias2, jnp.float32), W).reshape(1, -1)
    return wb1, b1, wb2, b2


def basic_block_pallas(x_nchw, wb1, b1, wb2, b2):
    """BasicBlock forward (stride=1, downsample=None). Returns NCHW f32."""
    N, C, H, W = x_nchw.shape
    WC = W * C
    assert wb1.shape == (3, WC, WC) and wb2.shape == (3, WC, WC), \
        "identity residual path requires inplanes == planes (stride=1)"

    # NCHW -> NHWC -> lane-dense (N, H, W*C); no host-side spatial padding.
    x2d = jnp.transpose(x_nchw, (0, 2, 3, 1)).reshape(N, H, WC).astype(jnp.float32)

    kernel = _make_kernel(H, WC)

    out2d = pl.pallas_call(
        kernel,
        out_shape=jax.ShapeDtypeStruct((N, H, WC), jnp.float32),
        grid_spec=pltpu.PrefetchScalarGridSpec(
            num_scalar_prefetch=0,
            grid=(N,),
            in_specs=[
                pl.BlockSpec((None, H, WC), lambda n: (n, 0, 0)),   # activation
                pl.BlockSpec((3, WC, WC), lambda n: (0, 0, 0)),     # conv1 band (bn1 scale folded)
                pl.BlockSpec((1, WC), lambda n: (0, 0)),            # bn1 bias
                pl.BlockSpec((3, WC, WC), lambda n: (0, 0, 0)),     # conv2 band (bn2 scale folded)
                pl.BlockSpec((1, WC), lambda n: (0, 0)),            # bn2 bias
            ],
            out_specs=pl.BlockSpec((None, H, WC), lambda n: (n, 0, 0)),
            scratch_shapes=[pltpu.VMEM((H + 2, WC), jnp.bfloat16)],
        ),
        compiler_params=pltpu.CompilerParams(
            dimension_semantics=("parallel",),
            vmem_limit_bytes=32 * 1024 * 1024),
    )(x2d, wb1, b1, wb2, b2)

    return jnp.transpose(out2d.reshape(N, H, W, C), (0, 3, 1, 2))


def basic_block_reference(x, w1_oihw, s1, b1, w2_oihw, s2, b2):
    """Pure-JAX f32 reference (NCHW, same folded-BN semantics)."""
    def conv(inp, w):
        return jax.lax.conv_general_dilated(
            inp, w, window_strides=(1, 1), padding=((1, 1), (1, 1)),
            dimension_numbers=("NCHW", "OIHW", "NCHW"))

    out = conv(x, w1_oihw)
    out = out * s1[None, :, None, None] + b1[None, :, None, None]
    out = jnp.maximum(out, 0.0)
    out = conv(out, w2_oihw)
    out = out * s2[None, :, None, None] + b2[None, :, None, None]
    out = jnp.maximum(out + x, 0.0)
    return out


if __name__ == "__main__":
    # BasicBlock(inplanes=planes=8), stride=1.  W*C == 128 -> lane-dense packing.
    N, C, H, W = 2, 8, 16, 16
    eps = 1e-5

    key = jax.random.PRNGKey(0)
    kx, kw1, kw2, kg1, kb1, km1, kv1, kg2, kb2, km2, kv2 = jax.random.split(key, 11)

    x = jax.random.normal(kx, (N, C, H, W), jnp.float32)

    # conv weights, PyTorch OIHW layout (bias=False)
    w1_oihw = 0.1 * jax.random.normal(kw1, (C, C, 3, 3), jnp.float32)
    w2_oihw = 0.1 * jax.random.normal(kw2, (C, C, 3, 3), jnp.float32)

    # BatchNorm params (eval-mode running stats)
    g1 = 1.0 + 0.1 * jax.random.normal(kg1, (C,), jnp.float32)
    be1 = 0.1 * jax.random.normal(kb1, (C,), jnp.float32)
    m1 = 0.1 * jax.random.normal(km1, (C,), jnp.float32)
    v1 = jnp.abs(jax.random.normal(kv1, (C,), jnp.float32)) + 0.5
    g2 = 1.0 + 0.1 * jax.random.normal(kg2, (C,), jnp.float32)
    be2 = 0.1 * jax.random.normal(kb2, (C,), jnp.float32)
    m2 = 0.1 * jax.random.normal(km2, (C,), jnp.float32)
    v2 = jnp.abs(jax.random.normal(kv2, (C,), jnp.float32)) + 0.5

    # fold BN into per-channel scale/bias (eval mode)
    scale1 = g1 / jnp.sqrt(v1 + eps)
    bias1 = be1 - m1 * scale1
    scale2 = g2 / jnp.sqrt(v2 + eps)
    bias2 = be2 - m2 * scale2

    params = prepare_params(w1_oihw, scale1, bias1, w2_oihw, scale2, bias2, W)

    out = basic_block_pallas(x, *params)
    out = jax.block_until_ready(out)

    ref = basic_block_reference(x, w1_oihw, scale1, bias1, w2_oihw, scale2, bias2)
    ref = jax.block_until_ready(ref)

    assert out.shape == (N, C, H, W), out.shape
    max_err = float(jnp.max(jnp.abs(out - ref)))
    # bf16 conv operands (f32 accumulation) vs f32 reference
    assert jnp.allclose(out, ref, rtol=5e-2, atol=5e-2), max_err
    print("KERNEL_OK")
</pallas_src>

<mosaic_0001>
module attributes {stable_mosaic.version = 11 : i64} {
  func.func @kernel(%arg0: i32, %arg1: memref<1x16x128xf32, #tpu.memory_space<vmem>>, %arg2: memref<3x128x128xbf16, #tpu.memory_space<vmem>>, %arg3: memref<1x128xf32, #tpu.memory_space<vmem>>, %arg4: memref<3x128x128xbf16, #tpu.memory_space<vmem>>, %arg5: memref<1x128xf32, #tpu.memory_space<vmem>>, %arg6: memref<1x16x128xf32, #tpu.memory_space<vmem>>, %arg7: memref<18x128xbf16, #tpu.memory_space<vmem>>) attributes {dimension_semantics = [#tpu.dimension_semantics<parallel>], iteration_bounds = array<i64: 2>, scalar_prefetch = 0 : i64, scratch_operands = 1 : i64, tpu.core_type = #tpu.core_type<tc>, window_params = [{transform_indices = @transform_0, window_bounds = array<i64: 1, 16, 128>}, {pipeline_mode = #tpu.pipeline_mode<synchronous>, transform_indices = @transform_1, window_bounds = array<i64: 3, 128, 128>}, {pipeline_mode = #tpu.pipeline_mode<synchronous>, transform_indices = @transform_2, window_bounds = array<i64: 1, 128>}, {pipeline_mode = #tpu.pipeline_mode<synchronous>, transform_indices = @transform_3, window_bounds = array<i64: 3, 128, 128>}, {pipeline_mode = #tpu.pipeline_mode<synchronous>, transform_indices = @transform_4, window_bounds = array<i64: 1, 128>}, {transform_indices = @transform_5, window_bounds = array<i64: 1, 16, 128>}]} {
    %c0 = arith.constant 0 : index
    %c0_0 = arith.constant 0 : index
    %c0_1 = arith.constant 0 : index
    %0 = vector.load %arg1[%c0, %c0_0, %c0_1] : memref<1x16x128xf32, #tpu.memory_space<vmem>>, vector<1x16x128xf32>
    %1 = vector.shape_cast %0 : vector<1x16x128xf32> to vector<16x128xf32>
    %cst = arith.constant 0.000000e+00 : bf16
    %2 = vector.broadcast %cst : bf16 to vector<1x128xbf16>
    %c0_2 = arith.constant 0 : index
    %c0_3 = arith.constant 0 : index
    %3 = vector.load %arg7[%c0_2, %c0_3] : memref<18x128xbf16, #tpu.memory_space<vmem>>, vector<1x128xbf16>
    tpu.vector_store %arg7[%c0_2, %c0_3], %2 {strides = array<i32>} : memref<18x128xbf16, #tpu.memory_space<vmem>>, vector<1x128xbf16>,
    %c17 = arith.constant 17 : index
    %c0_4 = arith.constant 0 : index
    %4 = vector.load %arg7[%c17, %c0_4] : memref<18x128xbf16, #tpu.memory_space<vmem>>, vector<1x128xbf16>
    tpu.vector_store %arg7[%c17, %c0_4], %2 {strides = array<i32>} : memref<18x128xbf16, #tpu.memory_space<vmem>>, vector<1x128xbf16>,
    %5 = arith.truncf %1 : vector<16x128xf32> to vector<16x128xbf16>
    %c1 = arith.constant 1 : index
    %c0_5 = arith.constant 0 : index
    %6 = vector.load %arg7[%c1, %c0_5] : memref<18x128xbf16, #tpu.memory_space<vmem>>, vector<16x128xbf16>
    tpu.vector_store %arg7[%c1, %c0_5], %5 {strides = array<i32>} : memref<18x128xbf16, #tpu.memory_space<vmem>>, vector<16x128xbf16>,
    %c0_6 = arith.constant 0 : index
    %c0_7 = arith.constant 0 : index
    %7 = vector.load %arg7[%c0_6, %c0_7] : memref<18x128xbf16, #tpu.memory_space<vmem>>, vector<16x128xbf16>
    %c0_8 = arith.constant 0 : index
    %c0_9 = arith.constant 0 : index
    %c0_10 = arith.constant 0 : index
    %8 = vector.load %arg2[%c0_8, %c0_9, %c0_10] : memref<3x128x128xbf16, #tpu.memory_space<vmem>>, vector<1x128x128xbf16>
    %9 = vector.shape_cast %8 : vector<1x128x128xbf16> to vector<128x128xbf16>
    %cst_11 = arith.constant dense<0.000000e+00> : vector<16x128xf32>
    %10 = tpu.matmul %7, %9, %cst_11 {dimension_numbers = #tpu.dot_dimension_numbers<[1], [0], [0], [1], [0, 0, 1, 1], [], []>} : vector<16x128xbf16>, vector<128x128xbf16>, vector<16x128xf32> -> vector<16x128xf32>
    %c1_12 = arith.constant 1 : index
    %c0_13 = arith.constant 0 : index
    %11 = vector.load %arg7[%c1_12, %c0_13] : memref<18x128xbf16, #tpu.memory_space<vmem>>, vector<16x128xbf16>
    %c1_14 = arith.constant 1 : index
    %c0_15 = arith.constant 0 : index
    %c0_16 = arith.constant 0 : index
    %12 = vector.load %arg2[%c1_14, %c0_15, %c0_16] : memref<3x128x128xbf16, #tpu.memory_space<vmem>>, vector<1x128x128xbf16>
    %13 = vector.shape_cast %12 : vector<1x128x128xbf16> to vector<128x128xbf16>
    %cst_17 = arith.constant dense<0.000000e+00> : vector<16x128xf32>
    %14 = tpu.matmul %11, %13, %cst_17 {dimension_numbers = #tpu.dot_dimension_numbers<[1], [0], [0], [1], [0, 0, 1, 1], [], []>} : vector<16x128xbf16>, vector<128x128xbf16>, vector<16x128xf32> -> vector<16x128xf32>
    %15 = arith.addf %10, %14 : vector<16x128xf32>
    %c2 = arith.constant 2 : index
    %c0_18 = arith.constant 0 : index
    %16 = vector.load %arg7[%c2, %c0_18] : memref<18x128xbf16, #tpu.memory_space<vmem>>, vector<16x128xbf16>
    %c2_19 = arith.constant 2 : index
    %c0_20 = arith.constant 0 : index
    %c0_21 = arith.constant 0 : index
    %17 = vector.load %arg2[%c2_19, %c0_20, %c0_21] : memref<3x128x128xbf16, #tpu.memory_space<vmem>>, vector<1x128x128xbf16>
    %18 = vector.shape_cast %17 : vector<1x128x128xbf16> to vector<128x128xbf16>
    %cst_22 = arith.constant dense<0.000000e+00> : vector<16x128xf32>
    %19 = tpu.matmul %16, %18, %cst_22 {dimension_numbers = #tpu.dot_dimension_numbers<[1], [0], [0], [1], [0, 0, 1, 1], [], []>} : vector<16x128xbf16>, vector<128x128xbf16>, vector<16x128xf32> -> vector<16x128xf32>
    %20 = arith.addf %15, %19 : vector<16x128xf32>
    %c0_23 = arith.constant 0 : index
    %c0_24 = arith.constant 0 : index
    %21 = vector.load %arg3[%c0_23, %c0_24] : memref<1x128xf32, #tpu.memory_space<vmem>>, vector<1x128xf32>
    %22 = vector.broadcast %21 : vector<1x128xf32> to vector<16x128xf32>
    %23 = arith.addf %20, %22 : vector<16x128xf32>
    %cst_25 = arith.constant 0.000000e+00 : f32
    %24 = vector.broadcast %cst_25 : f32 to vector<16x128xf32>
    %25 = arith.maximumf %23, %24 : vector<16x128xf32>
    %26 = arith.truncf %25 : vector<16x128xf32> to vector<16x128xbf16>
    %c1_26 = arith.constant 1 : index
    %c0_27 = arith.constant 0 : index
    %27 = vector.load %arg7[%c1_26, %c0_27] : memref<18x128xbf16, #tpu.memory_space<vmem>>, vector<16x128xbf16>
    tpu.vector_store %arg7[%c1_26, %c0_27], %26 {strides = array<i32>} : memref<18x128xbf16, #tpu.memory_space<vmem>>, vector<16x128xbf16>,
    %c0_28 = arith.constant 0 : index
    %c0_29 = arith.constant 0 : index
    %28 = vector.load %arg7[%c0_28, %c0_29] : memref<18x128xbf16, #tpu.memory_space<vmem>>, vector<16x128xbf16>
    %c0_30 = arith.constant 0 : index
    %c0_31 = arith.constant 0 : index
    %c0_32 = arith.constant 0 : index
    %29 = vector.load %arg4[%c0_30, %c0_31, %c0_32] : memref<3x128x128xbf16, #tpu.memory_space<vmem>>, vector<1x128x128xbf16>
    %30 = vector.shape_cast %29 : vector<1x128x128xbf16> to vector<128x128xbf16>
    %cst_33 = arith.constant dense<0.000000e+00> : vector<16x128xf32>
    %31 = tpu.matmul %28, %30, %cst_33 {dimension_numbers = #tpu.dot_dimension_numbers<[1], [0], [0], [1], [0, 0, 1, 1], [], []>} : vector<16x128xbf16>, vector<128x128xbf16>, vector<16x128xf32> -> vector<16x128xf32>
    %c1_34 = arith.constant 1 : index
    %c0_35 = arith.constant 0 : index
    %32 = vector.load %arg7[%c1_34, %c0_35] : memref<18x128xbf16, #tpu.memory_space<vmem>>, vector<16x128xbf16>
    %c1_36 = arith.constant 1 : index
    %c0_37 = arith.constant 0 : index
    %c0_38 = arith.constant 0 : index
    %33 = vector.load %arg4[%c1_36, %c0_37, %c0_38] : memref<3x128x128xbf16, #tpu.memory_space<vmem>>, vector<1x128x128xbf16>
    %34 = vector.shape_cast %33 : vector<1x128x128xbf16> to vector<128x128xbf16>
    %cst_39 = arith.constant dense<0.000000e+00> : vector<16x128xf32>
    %35 = tpu.matmul %32, %34, %cst_39 {dimension_numbers = #tpu.dot_dimension_numbers<[1], [0], [0], [1], [0, 0, 1, 1], [], []>} : vector<16x128xbf16>, vector<128x128xbf16>, vector<16x128xf32> -> vector<16x128xf32>
    %36 = arith.addf %31, %35 : vector<16x128xf32>
    %c2_40 = arith.constant 2 : index
    %c0_41 = arith.constant 0 : index
    %37 = vector.load %arg7[%c2_40, %c0_41] : memref<18x128xbf16, #tpu.memory_space<vmem>>, vector<16x128xbf16>
    %c2_42 = arith.constant 2 : index
    %c0_43 = arith.constant 0 : index
    %c0_44 = arith.constant 0 : index
    %38 = vector.load %arg4[%c2_42, %c0_43, %c0_44] : memref<3x128x128xbf16, #tpu.memory_space<vmem>>, vector<1x128x128xbf16>
    %39 = vector.shape_cast %38 : vector<1x128x128xbf16> to vector<128x128xbf16>
    %cst_45 = arith.constant dense<0.000000e+00> : vector<16x128xf32>
    %40 = tpu.matmul %37, %39, %cst_45 {dimension_numbers = #tpu.dot_dimension_numbers<[1], [0], [0], [1], [0, 0, 1, 1], [], []>} : vector<16x128xbf16>, vector<128x128xbf16>, vector<16x128xf32> -> vector<16x128xf32>
    %41 = arith.addf %36, %40 : vector<16x128xf32>
    %c0_46 = arith.constant 0 : index
    %c0_47 = arith.constant 0 : index
    %42 = vector.load %arg5[%c0_46, %c0_47] : memref<1x128xf32, #tpu.memory_space<vmem>>, vector<1x128xf32>
    %43 = vector.broadcast %42 : vector<1x128xf32> to vector<16x128xf32>
    %44 = arith.addf %41, %43 : vector<16x128xf32>
    %45 = arith.addf %44, %1 : vector<16x128xf32>
    %cst_48 = arith.constant 0.000000e+00 : f32
    %46 = vector.broadcast %cst_48 : f32 to vector<16x128xf32>
    %47 = arith.maximumf %45, %46 : vector<16x128xf32>
    %c0_49 = arith.constant 0 : index
    %c0_50 = arith.constant 0 : index
    %c0_51 = arith.constant 0 : index
    %48 = vector.load %arg6[%c0_49, %c0_50, %c0_51] : memref<1x16x128xf32, #tpu.memory_space<vmem>>, vector<1x16x128xf32>
    %49 = vector.shape_cast %48 : vector<1x16x128xf32> to vector<16x128xf32>
    %50 = vector.shape_cast %47 : vector<16x128xf32> to vector<1x16x128xf32>
    tpu.vector_store %arg6[%c0_49, %c0_50, %c0_51], %50 {strides = array<i32>} : memref<1x16x128xf32, #tpu.memory_space<vmem>>, vector<1x16x128xf32>,
    return
  }
  func.func @transform_0(%arg0: i32) -> (i32, i32, i32) {
    %c0_i32 = arith.constant 0 : i32
    %c0_i32_0 = arith.constant 0 : i32
    %c0_i32_1 = arith.constant 0 : i32
    return %arg0, %c0_i32, %c0_i32_0 : i32, i32, i32
  }
  func.func @transform_1(%arg0: i32) -> (i32, i32, i32) {
    %c0_i32 = arith.constant 0 : i32
    %c0_i32_0 = arith.constant 0 : i32
    %c0_i32_1 = arith.constant 0 : i32
    %c0_i32_2 = arith.constant 0 : i32
    return %c0_i32, %c0_i32_0, %c0_i32_1 : i32, i32, i32
  }
  func.func @transform_2(%arg0: i32) -> (i32, i32) {
    %c0_i32 = arith.constant 0 : i32
    %c0_i32_0 = arith.constant 0 : i32
    %c0_i32_1 = arith.constant 0 : i32
    return %c0_i32, %c0_i32_0 : i32, i32
  }
  func.func @transform_3(%arg0: i32) -> (i32, i32, i32) {
    %c0_i32 = arith.constant 0 : i32
    %c0_i32_0 = arith.constant 0 : i32
    %c0_i32_1 = arith.constant 0 : i32
    %c0_i32_2 = arith.constant 0 : i32
    return %c0_i32, %c0_i32_0, %c0_i32_1 : i32, i32, i32
  }
  func.func @transform_4(%arg0: i32) -> (i32, i32) {
    %c0_i32 = arith.constant 0 : i32
    %c0_i32_0 = arith.constant 0 : i32
    %c0_i32_1 = arith.constant 0 : i32
    return %c0_i32, %c0_i32_0 : i32, i32
  }
  func.func @transform_5(%arg0: i32) -> (i32, i32, i32) {
    %c0_i32 = arith.constant 0 : i32
    %c0_i32_0 = arith.constant 0 : i32
    %c0_i32_1 = arith.constant 0 : i32
    return %arg0, %c0_i32, %c0_i32_0 : i32, i32, i32
  }
}

</mosaic_0001>

<llo_original>
// kernel: tpu_custom_call.1
$region0: #{tpu_custom_call.1}
  #allocation0 [shape = 'u32[]', space=smem, size = 0x4, offset = 0x4, fixed_abs, tag = 'smem constant byte address 0x4 - core index']
  #allocation1 [shape = 'u32[72,128]{1,0:T(1,128)}', space=vmem, size = 0x9000, scoped, tag = 'internal scratch']
  #allocation2 [shape = 'bf16[18,128]{1,0:T(8,128)(2,1)}', space=vmem, size = 0x1800, scoped, tag = 'scratch operand']
  %s0 = inlined_call_operand.hbm [shape: f32[2,16,128], index: 0, kind: input, shape index: {}]
  %s1 = inlined_call_operand.hbm [shape: bf16[3,128,128], index: 1, kind: input, shape index: {}]
  %s2 = inlined_call_operand.vmem [shape: f32[1,128], index: 2, kind: input, shape index: {}]
  %s3 = inlined_call_operand.hbm [shape: bf16[3,128,128], index: 3, kind: input, shape index: {}]
  %s4 = inlined_call_operand.vmem [shape: f32[1,128], index: 4, kind: input, shape index: {}]
  %s5 = inlined_call_operand.hbm [shape: f32[2,16,128], index: 5, kind: output, shape index: {}]
  %s6 = sld [smem:[#allocation0]]
  $region65: #{tpu_custom_call.1} parent=0
    _
  %s8 = ssub.s32 1, %s6
  %s9 = scalar_select 0, %s8, %s6
  $region1: #{tpu_custom_call.1} parent=0
    #allocation3 [shape = 'u8[16384]{0}', space=vmem, size = 0x4000, scoped, tag = 'input window, operand 0']
    #allocation4 [shape = 's32[2]{0}', space=sflag, size = 0x8, scoped, tag = 'scoped memory for tpu_custom_call.1']
    #allocation5 [shape = 's32[2]{0}', space=sflag, size = 0x8, scoped, tag = 'scoped memory for tpu_custom_call.1']
    #allocation6 [shape = 'u8[98304]{0}', space=vmem, size = 0x18000, scoped, tag = 'input window, operand 1, single buffered']
    #allocation7 [shape = 's32[1]{0}', space=sflag, size = 0x4, scoped, tag = 'scoped memory for tpu_custom_call.1']
    #allocation8 [shape = 'u8[98304]{0}', space=vmem, size = 0x18000, scoped, tag = 'input window, operand 3, single buffered']
    #allocation9 [shape = 'u8[16384]{0}', space=vmem, size = 0x4000, scoped, tag = 'output window, operand 0']
    %10 = vsyncpa [#allocation4], 0
    %s11 = scalar_lea.sflag [#allocation4], 1
    %12 = vsyncpa %s11, 0
    %13 = vsyncpa [#allocation7], 0
    %14 = vsyncpa [#allocation5], 0
    %s15 = scalar_lea.sflag [#allocation5], 1
    %16 = vsyncpa %s15, 0
    loop: start=0, step=1, limit=4
    $region2: #{tpu_custom_call.1} parent=1 // loop_pre_header
      _
    $region3: #{tpu_custom_call.1} parent=1 // loop_header
      %s18 = sphi 0, %s22
      %p19 = scmp.ge.s32.totalorder %s18, 4
      %s28 = sphi 0, %s30
      %s31 = sphi 0, %s28
      %s32 = sphi 0, %s31
      %s48 = sphi 0, %s32
      %s52 = sphi 0, %s52
      %s54 = sphi 0, %s52
      %s55 = sphi 0, %s54
      %s69 = sphi 0, %s55
      %s73 = sphi 0, %s73
      %s75 = sphi 0, %s73
      %s76 = sphi 0, %s75
      %s90 = sphi 0, %s76
      %s94 = sphi 0, %s94
      %s96 = sphi 0, %s94
      %s97 = sphi 0, %s96
      %s111 = sphi 0, %s97
      %s115 = sphi 0, %s115
      %s117 = sphi 0, %s115
      %s118 = sphi 0, %s117
      %s132 = sphi 0, %s118
      %s138 = sphi 0, %s140
      %s141 = sphi 0, %s138
      %s142 = sphi 0, %s141
      %s158 = sphi 0, %s142
    $region4: #{tpu_custom_call.1} parent=1 // loop_header_branch
      %21 = sbr.rel (%p19) target = $region8
    $region5: #{tpu_custom_call.1} parent=1 // loop_body
      %s23 = ssub.s32 %s18, 1
      %s24 = ssub.s32 %s18, 2
      %s25 = sadd.s32 %s18, 1
      %s26 = ssub.s32 %s18, %s25
      %p27 = scmp.eq.s32.totalorder %s26, 0
      %s29 = sadd.s32 %s28, 1
      %s30 = scalar_select %p27, %s28, %s29
      %p33 = pneg %p27
      %p34 = scmp.eq.s32.totalorder %s18, 1
      %p35 = por %p33, %p34
      %p36 = scmp.ne.s32.totalorder %s28, %s31
      %p37 = scmp.eq.s32.totalorder %s18, 0
      %p38 = por %p36, %p37
      %p39 = scmp.ne.s32.totalorder %s28, %s31
      %p40 = scmp.eq.s32.totalorder %s23, 1
      %p41 = por %p39, %p40
      %p42 = scmp.ne.s32.totalorder %s31, %s32
      %p43 = scmp.eq.s32.totalorder %s23, 0
      %p44 = por %p42, %p43
      %p45 = scmp.ne.s32.totalorder %s31, %s32
      %p46 = scmp.eq.s32.totalorder %s24, 1
      %p47 = por %p45, %p46
      %p49 = scmp.ne.s32.totalorder %s32, %s48
      %p50 = scmp.eq.s32.totalorder %s24, 0
      %p51 = por %p49, %p50
      %s53 = sadd.s32 %s52, 1
      %p56 = scmp.eq.s32.totalorder %s18, 1
      %p57 = scmp.ne.s32.totalorder %s52, %s54
      %p58 = scmp.eq.s32.totalorder %s18, 0
      %p59 = por %p57, %p58
      %p60 = scmp.ne.s32.totalorder %s52, %s54
      %p61 = scmp.eq.s32.totalorder %s23, 1
      %p62 = por %p60, %p61
      %p63 = scmp.ne.s32.totalorder %s54, %s55
      %p64 = scmp.eq.s32.totalorder %s23, 0
      %p65 = por %p63, %p64
      %p66 = scmp.ne.s32.totalorder %s54, %s55
      %p67 = scmp.eq.s32.totalorder %s24, 1
      %p68 = por %p66, %p67
      %p70 = scmp.ne.s32.totalorder %s55, %s69
      %p71 = scmp.eq.s32.totalorder %s24, 0
      %p72 = por %p70, %p71
      %s74 = sadd.s32 %s73, 1
      %p77 = scmp.eq.s32.totalorder %s18, 1
      %p78 = scmp.ne.s32.totalorder %s73, %s75
      %p79 = scmp.eq.s32.totalorder %s18, 0
      %p80 = por %p78, %p79
      %p81 = scmp.ne.s32.totalorder %s73, %s75
      %p82 = scmp.eq.s32.totalorder %s23, 1
      %p83 = por %p81, %p82
      %p84 = scmp.ne.s32.totalorder %s75, %s76
      %p85 = scmp.eq.s32.totalorder %s23, 0
      %p86 = por %p84, %p85
      %p87 = scmp.ne.s32.totalorder %s75, %s76
      %p88 = scmp.eq.s32.totalorder %s24, 1
      %p89 = por %p87, %p88
      %p91 = scmp.ne.s32.totalorder %s76, %s90
      %p92 = scmp.eq.s32.totalorder %s24, 0
      %p93 = por %p91, %p92
      %s95 = sadd.s32 %s94, 1
      %p98 = scmp.eq.s32.totalorder %s18, 1
      %p99 = scmp.ne.s32.totalorder %s94, %s96
      %p100 = scmp.eq.s32.totalorder %s18, 0
      %p101 = por %p99, %p100
      %p102 = scmp.ne.s32.totalorder %s94, %s96
      %p103 = scmp.eq.s32.totalorder %s23, 1
      %p104 = por %p102, %p103
      %p105 = scmp.ne.s32.totalorder %s96, %s97
      %p106 = scmp.eq.s32.totalorder %s23, 0
      %p107 = por %p105, %p106
      %p108 = scmp.ne.s32.totalorder %s96, %s97
      %p109 = scmp.eq.s32.totalorder %s24, 1
      %p110 = por %p108, %p109
      %p112 = scmp.ne.s32.totalorder %s97, %s111
      %p113 = scmp.eq.s32.totalorder %s24, 0
      %p114 = por %p112, %p113
      %s116 = sadd.s32 %s115, 1
      %p119 = scmp.eq.s32.totalorder %s18, 1
      %p120 = scmp.ne.s32.totalorder %s115, %s117
      %p121 = scmp.eq.s32.totalorder %s18, 0
      %p122 = por %p120, %p121
      %p123 = scmp.ne.s32.totalorder %s115, %s117
      %p124 = scmp.eq.s32.totalorder %s23, 1
      %p125 = por %p123, %p124
      %p126 = scmp.ne.s32.totalorder %s117, %s118
      %p127 = scmp.eq.s32.totalorder %s23, 0
      %p128 = por %p126, %p127
      %p129 = scmp.ne.s32.totalorder %s117, %s118
      %p130 = scmp.eq.s32.totalorder %s24, 1
      %p131 = por %p129, %p130
      %p133 = scmp.ne.s32.totalorder %s118, %s132
      %p134 = scmp.eq.s32.totalorder %s24, 0
      %p135 = por %p133, %p134
      %s136 = ssub.s32 %s18, %s25
      %p137 = scmp.eq.s32.totalorder %s136, 0
      %s139 = sadd.s32 %s138, 1
      %s140 = scalar_select %p137, %s138, %s139
      %p143 = pneg %p137
      %p144 = scmp.eq.s32.totalorder %s18, 1
      %p145 = por %p143, %p144
      %p146 = scmp.ne.s32.totalorder %s138, %s141
      %p147 = scmp.eq.s32.totalorder %s18, 0
      %p148 = por %p146, %p147
      %p149 = scmp.ne.s32.totalorder %s138, %s141
      %p150 = scmp.eq.s32.totalorder %s23, 1
      %p151 = por %p149, %p150
      %p152 = scmp.ne.s32.totalorder %s141, %s142
      %p153 = scmp.eq.s32.totalorder %s23, 0
      %p154 = por %p152, %p153
      %p155 = scmp.ne.s32.totalorder %s141, %s142
      %p156 = scmp.eq.s32.totalorder %s24, 1
      %p157 = por %p155, %p156
      %p159 = scmp.ne.s32.totalorder %s142, %s158
      %p160 = scmp.eq.s32.totalorder %s24, 0
      %p161 = por %p159, %p160
      %p162 = scmp.le.s32.totalorder 1, %s18
      %p163 = scmp.lt.s32.totalorder %s18, 3
      %p164 = pnand %p162, %p163
      %p165 = pneg %p164
      // Predicated region
      $region9: #{tpu_custom_call.1} parent=5 // pred_check
        _
      $region10: #{tpu_custom_call.1} parent=5 // pred_check_branch
        %167 = sbr.rel (%p164) target = $region12
      $region11: #{tpu_custom_call.1} parent=5 // pred_region
        %s168 = ssub.s32 %s18, 1
        // Predicated region
        $region13: #{tpu_custom_call.1} parent=11 // pred_check
          %p169 = pneg %p65
        $region14: #{tpu_custom_call.1} parent=11 // pred_check_branch
          %171 = sbr.rel (%p169) target = $region16
        $region15: #{tpu_custom_call.1} parent=11 // pred_region
          %173 = vsyncadd [#allocation7], 0
          %s174 = sshll.u32 %s1, 4
          %s175 = int_to_ptr.hbm [resolvable:$true] %s174
          %s176 = sshll.u32 [#allocation6], 4
          %s177 = int_to_ptr.vmem [resolvable:$true] %s176
          %182 = dma.hbm_to_vmem [thread:$0]  %s175, 3072, %s177, [#allocation7], 64, 64, 4
        $region16: #{tpu_custom_call.1} parent=11 // pred_fallthru
          _
        // Predicated region
        $region17: #{tpu_custom_call.1} parent=11 // pred_check
          %p183 = pneg %p86
        $region18: #{tpu_custom_call.1} parent=11 // pred_check_branch
          %185 = sbr.rel (%p183) target = $region20
        $region19: #{tpu_custom_call.1} parent=11 // pred_region
          _
        $region20: #{tpu_custom_call.1} parent=11 // pred_fallthru
          _
        // Predicated region
        $region21: #{tpu_custom_call.1} parent=11 // pred_check
          %p186 = pneg %p107
        $region22: #{tpu_custom_call.1} parent=11 // pred_check_branch
          %188 = sbr.rel (%p186) target = $region24
        $region23: #{tpu_custom_call.1} parent=11 // pred_region
          %190 = vsyncadd [#allocation7], 0
          %s191 = sshll.u32 %s3, 4
          %s192 = int_to_ptr.hbm [resolvable:$true] %s191
          %s193 = sshll.u32 [#allocation8], 4
          %s194 = int_to_ptr.vmem [resolvable:$true] %s193
          %199 = dma.hbm_to_vmem [thread:$0]  %s192, 3072, %s194, [#allocation7], 64, 64, 4
        $region24: #{tpu_custom_call.1} parent=11 // pred_fallthru
          _
        // Predicated region
        $region25: #{tpu_custom_call.1} parent=11 // pred_check
          %p200 = pneg %p128
        $region26: #{tpu_custom_call.1} parent=11 // pred_check_branch
          %202 = sbr.rel (%p200) target = $region28
        $region27: #{tpu_custom_call.1} parent=11 // pred_region
          _
        $region28: #{tpu_custom_call.1} parent=11 // pred_fallthru
          _
      $region12: #{tpu_custom_call.1} parent=5 // pred_fallthru
        _
      %p203 = scmp.lt.s32.totalorder %s18, 2
      // Predicated region
      $region29: #{tpu_custom_call.1} parent=5 // pred_check
        %p204 = pneg %p203
      $region30: #{tpu_custom_call.1} parent=5 // pred_check_branch
        %206 = sbr.rel (%p204) target = $region32
      $region31: #{tpu_custom_call.1} parent=5 // pred_region
        // Predicated region
        $region33: #{tpu_custom_call.1} parent=31 // pred_check
          %p207 = pneg %p38
        $region34: #{tpu_custom_call.1} parent=31 // pred_check_branch
          %209 = sbr.rel (%p207) target = $region36
        $region35: #{tpu_custom_call.1} parent=31 // pred_region
          %s210 = sand.u32 %s28, 1
          %s211 = scalar_lea.sflag [#allocation4], %s210
          %s212 = sand.u32 %s28, 1
          %s213 = smul.addr %s212, 16
          %s214 = scalar_lea.vmem [#allocation3], %s213
          %216 = vsyncadd %s211, 0
          %s217 = smul.addr %s18, 2
          %s218 = smul.addr %s217, 8
          %s219 = scalar_lea.hbm %s0, %s218
          %s220 = sshll.u32 %s219, 4
          %s221 = int_to_ptr.hbm [resolvable:$true] %s220
          %s222 = sshll.u32 %s214, 4
          %s223 = int_to_ptr.vmem [resolvable:$true] %s222
          %228 = dma.hbm_to_vmem [thread:$0]  %s221, 256, %s223, %s211, 128, 128, 8
        $region36: #{tpu_custom_call.1} parent=31 // pred_fallthru
          _
      $region32: #{tpu_custom_call.1} parent=5 // pred_fallthru
        _
      %p229 = scmp.le.s32.totalorder 1, %s18
      %p230 = scmp.lt.s32.totalorder %s18, 3
      %p231 = pnand %p229, %p230
      %p232 = pneg %p231
      // Predicated region
      $region37: #{tpu_custom_call.1} parent=5 // pred_check
        _
      $region38: #{tpu_custom_call.1} parent=5 // pred_check_branch
        %234 = sbr.rel (%p231) target = $region40
      $region39: #{tpu_custom_call.1} parent=5 // pred_region
        %s235 = ssub.s32 %s18, 1
        %s236 = sand.u32 %s31, 1
        %s237 = scalar_lea.sflag [#allocation4], %s236
        %s238 = sand.u32 %s31, 1
        %s239 = smul.addr %s238, 16
        %s240 = scalar_lea.vmem [#allocation3], %s239
        // Predicated region
        $region41: #{tpu_custom_call.1} parent=39 // pred_check
          %p241 = pneg %p44
        $region42: #{tpu_custom_call.1} parent=39 // pred_check_branch
          %243 = sbr.rel (%p241) target = $region44
        $region43: #{tpu_custom_call.1} parent=39 // pred_region
          %245 = dma.done %s237, 256
        $region44: #{tpu_custom_call.1} parent=39 // pred_fallthru
          _
        // Predicated region
        $region45: #{tpu_custom_call.1} parent=39 // pred_check
          %p246 = pneg %p65
        $region46: #{tpu_custom_call.1} parent=39 // pred_check_branch
          %248 = sbr.rel (%p246) target = $region48
        $region47: #{tpu_custom_call.1} parent=39 // pred_region
          %250 = dma.done [#allocation7], 3072
        $region48: #{tpu_custom_call.1} parent=39 // pred_fallthru
          _
        // Predicated region
        $region49: #{tpu_custom_call.1} parent=39 // pred_check
          %p251 = pneg %p107
        $region50: #{tpu_custom_call.1} parent=39 // pred_check_branch
          %253 = sbr.rel (%p251) target = $region52
        $region51: #{tpu_custom_call.1} parent=39 // pred_region
          %255 = dma.done [#allocation7], 3072
        $region52: #{tpu_custom_call.1} parent=39 // pred_fallthru
          _
        %s256 = sand.u32 %s31, 1
        %s257 = scalar_lea.sflag [#allocation4], %s256
        %s258 = sand.u32 %s31, 1
        %s259 = smul.addr %s258, 16
        %s260 = scalar_lea.vmem [#allocation3], %s259
        %p261 = pneg %p44
        %p262 = pneg %p41
        %p263 = pneg %p65
        %p264 = pneg %p62
        %p265 = pneg %p86
        %p266 = pneg %p83
        %p267 = pneg %p107
        %p268 = pneg %p104
        %p269 = pneg %p128
        %p270 = pneg %p125
        %p271 = pneg %p154
        %p272 = pneg %p151
        %s273 = sand.u32 %s141, 1
        %s274 = scalar_lea.sflag [#allocation5], %s273
        %s275 = sand.u32 %s141, 1
        %s276 = smul.addr %s275, 16
        %s277 = scalar_lea.vmem [#allocation9], %s276
        %v279 = vld [vmem:[%s240] sm:$0xff]
        %v280 = vld [vmem:[%s240 + $0x8] sm:$0xff]
        %vm281 = vcmask 1040384
        %vm282 = vsmask.f32 256
        %vm283 = vmand %vm281, %vm282
        %v284 = vld [vmem:[#allocation2] sm:$0x1]
        %v285 = vsel %vm283, 0, %v284
        %286 = vst [vmem:[#allocation2] sm:$0x1] %v285
        %vm287 = vsmask.f32 7938
        %vm288 = vmand %vm281, %vm287
        %v289 = vld [vmem:[#allocation2 + $0x8] sm:$0x1]
        %v290 = vsel %vm288, 0, %v289
        %291 = vst [vmem:[#allocation2 + $0x8] sm:$0x1] %v290
        %v292 = vpack.c.bf16 %v279, %v279
        %v293 = vpack.c.bf16 %v280, %v280
        %vm294 = vsmask.f32 4368
        %vm295 = vmor %vm282, %vm294
        %v297 = vshrl.u32 %v292, 16
        %v299 = vrot.slane %v297, 7
        %v300 = vshll.u32 %v292, 16
        %v302 = vor.u32 %v299, %v300
        %v303 = vrot.slane %v299, 4
        %v305 = vshrl.u32 %v293, 16
        %v307 = vrot.slane %v305, 7
        %v308 = vshll.u32 %v293, 16
        %v310 = vor.u32 %v307, %v308
        %v311 = vsel %vm295, %v303, %v310
        %v312 = vrot.slane %v307, 4
        %vm316 = vcmask 1043456
        %vm317 = vmand %vm316, %vm287
        %v318 = vld [vmem:[#allocation2] sm:$0xf]
        %v319 = vsel %vm317, %v302, %v318
        %320 = vst [vmem:[#allocation2] sm:$0xf] %v319
        %321 = vst [vmem:[#allocation2 + $0x4] sm:$0xf] %v311
        %v322 = vld [vmem:[#allocation2 + $0x8] sm:$0x1]
        %v323 = vsel %vm283, %v312, %v322
        %324 = vst [vmem:[#allocation2 + $0x8] sm:$0x1] %v323
        %v325 = vld [vmem:[#allocation2] sm:$0xf]
        %v326 = vld [vmem:[#allocation2 + $0x4] sm:$0xf]
        %v327 = vld [vmem:[#allocation6] sm:$0xf]
        %v328 = vld [vmem:[#allocation6 + $0x4] sm:$0xf]
        %v329 = vld [vmem:[#allocation6 + $0x8] sm:$0xf]
        %v330 = vld [vmem:[#allocation6 + $0xc] sm:$0xf]
        %v331 = vld [vmem:[#allocation6 + $0x10] sm:$0xf]
        %v332 = vld [vmem:[#allocation6 + $0x14] sm:$0xf]
        %v333 = vld [vmem:[#allocation6 + $0x18] sm:$0xf]
        %v334 = vld [vmem:[#allocation6 + $0x1c] sm:$0xf]
        %v335 = vld [vmem:[#allocation6 + $0x20] sm:$0xf]
        %v336 = vld [vmem:[#allocation6 + $0x24] sm:$0xf]
        %v337 = vld [vmem:[#allocation6 + $0x28] sm:$0xf]
        %v338 = vld [vmem:[#allocation6 + $0x2c] sm:$0xf]
        %v339 = vld [vmem:[#allocation6 + $0x30] sm:$0xf]
        %v340 = vld [vmem:[#allocation6 + $0x34] sm:$0xf]
        %v341 = vld [vmem:[#allocation6 + $0x38] sm:$0xf]
        %v342 = vld [vmem:[#allocation6 + $0x3c] sm:$0xf]
        %v343 = vld [vmem:[#allocation2 + $0x8] sm:$0x1]
        %s344 = scalar_lea.vmem [#allocation6], 64
        %v345 = vld [vmem:[%s344] sm:$0xf]
        %v346 = vld [vmem:[%s344 + $0x4] sm:$0xf]
        %v347 = vld [vmem:[%s344 + $0x8] sm:$0xf]
        %v348 = vld [vmem:[%s344 + $0xc] sm:$0xf]
        %v349 = vld [vmem:[%s344 + $0x10] sm:$0xf]
        %v350 = vld [vmem:[%s344 + $0x14] sm:$0xf]
        %v351 = vld [vmem:[%s344 + $0x18] sm:$0xf]
        %v352 = vld [vmem:[%s344 + $0x1c] sm:$0xf]
        %v353 = vld [vmem:[%s344 + $0x20] sm:$0xf]
        %v354 = vld [vmem:[%s344 + $0x24] sm:$0xf]
        %v355 = vld [vmem:[%s344 + $0x28] sm:$0xf]
        %v356 = vld [vmem:[%s344 + $0x2c] sm:$0xf]
        %v357 = vld [vmem:[%s344 + $0x30] sm:$0xf]
        %v358 = vld [vmem:[%s344 + $0x34] sm:$0xf]
        %v359 = vld [vmem:[%s344 + $0x38] sm:$0xf]
        %v360 = vld [vmem:[%s344 + $0x3c] sm:$0xf]
        %v364 = vunpack.c.l.b16 %v325
        %v365 = vunpack.c.l.b16 %v326
        %v366 = vunpack.c.l.b16 %v343
        %v367 = vpack.c.b16 %v365, %v364
        %v368 = vpack.c.b16 %v366, %v366
        %vm369 = vsmask.f32 7424
        %v371 = vshrl.u32 %v367, 16
        %v373 = vshll.u32 %v367, 16
        %v375 = vrot.slane %v373, 1
        %v376 = vor.u32 %v371, %v375
        %v378 = vshll.u32 %v368, 16
        %v380 = vrot.slane %v378, 1
        %v381 = vsel %vm369, %v376, %v380
        %v399 = vunpack.c.l.b16 %v345
        %v400 = vunpack.c.l.b16 %v346
        %v401 = vunpack.c.l.b16 %v347
        %v402 = vunpack.c.l.b16 %v348
        %v403 = vunpack.c.l.b16 %v349
        %v404 = vunpack.c.l.b16 %v350
        %v405 = vunpack.c.l.b16 %v351
        %v406 = vunpack.c.l.b16 %v352
        %v407 = vunpack.c.l.b16 %v353
        %v408 = vunpack.c.l.b16 %v354
        %v409 = vunpack.c.l.b16 %v355
        %v410 = vunpack.c.l.b16 %v356
        %v411 = vunpack.c.l.b16 %v357
        %v412 = vunpack.c.l.b16 %v358
        %v413 = vunpack.c.l.b16 %v359
        %v414 = vunpack.c.l.b16 %v360
        %v415 = vpack.c.b16 %v400, %v399
        %v416 = vpack.c.b16 %v402, %v401
        %v417 = vpack.c.b16 %v404, %v403
        %v418 = vpack.c.b16 %v406, %v405
        %v419 = vpack.c.b16 %v408, %v407
        %v420 = vpack.c.b16 %v410, %v409
        %v421 = vpack.c.b16 %v412, %v411
        %v422 = vpack.c.b16 %v414, %v413
        %431 = vmatpush.bf16.msra.mxu0 %v422
        %432 = vmatpush.bf16.msra.mxu0 %v421
        %433 = vmatpush.bf16.msra.mxu0 %v420
        %434 = vmatpush.bf16.msra.mxu0 %v419
        %435 = vmatpush.bf16.msra.mxu0 %v418
        %436 = vmatpush.bf16.msra.mxu0 %v417
        %437 = vmatpush.bf16.msra.mxu0 %v416
        %438 = vmatpush.bf16.msra.mxu0 %v415
        %439 = vmatmul.bf16.gmra.mxu0 %v381
        %v440 = vpop.f32.mrf.mxu0
        %v441 = vadd.f32 0.0, %v440
        %v442 = vpop.f32.mrf.mxu0
        %v443 = vadd.f32 0.0, %v442
        %444 = vdwg.mxu0
        %v462 = vunpack.c.l.b16 %v327
        %v463 = vunpack.c.l.b16 %v328
        %v464 = vunpack.c.l.b16 %v329
        %v465 = vunpack.c.l.b16 %v330
        %v466 = vunpack.c.l.b16 %v331
        %v467 = vunpack.c.l.b16 %v332
        %v468 = vunpack.c.l.b16 %v333
        %v469 = vunpack.c.l.b16 %v334
        %v470 = vunpack.c.l.b16 %v335
        %v471 = vunpack.c.l.b16 %v336
        %v472 = vunpack.c.l.b16 %v337
        %v473 = vunpack.c.l.b16 %v338
        %v474 = vunpack.c.l.b16 %v339
        %v475 = vunpack.c.l.b16 %v340
        %v476 = vunpack.c.l.b16 %v341
        %v477 = vunpack.c.l.b16 %v342
        %v478 = vpack.c.b16 %v463, %v462
        %v479 = vpack.c.b16 %v465, %v464
        %v480 = vpack.c.b16 %v467, %v466
        %v481 = vpack.c.b16 %v469, %v468
        %v482 = vpack.c.b16 %v471, %v470
        %v483 = vpack.c.b16 %v473, %v472
        %v484 = vpack.c.b16 %v475, %v474
        %v485 = vpack.c.b16 %v477, %v476
        %494 = vmatpush.bf16.msra.mxu0 %v485
        %495 = vmatpush.bf16.msra.mxu0 %v484
        %496 = vmatpush.bf16.msra.mxu0 %v483
        %497 = vmatpush.bf16.msra.mxu0 %v482
        %498 = vmatpush.bf16.msra.mxu0 %v481
        %499 = vmatpush.bf16.msra.mxu0 %v480
        %500 = vmatpush.bf16.msra.mxu0 %v479
        %501 = vmatpush.bf16.msra.mxu0 %v478
        %502 = vmatmul.bf16.gmra.mxu0 %v367
        %v503 = vpop.f32.mrf.mxu0
        %v504 = vadd.f32 %v441, %v503
        %v505 = vpop.f32.mrf.mxu0
        %v506 = vadd.f32 %v443, %v505
        %507 = vdwg.mxu0
        %v508 = vld [vmem:[#allocation2] sm:$0xe]
        %s509 = scalar_lea.vmem [#allocation6], 128
        %v510 = vld [vmem:[%s509] sm:$0xf]
        %v511 = vld [vmem:[%s509 + $0x4] sm:$0xf]
        %v512 = vld [vmem:[%s509 + $0x8] sm:$0xf]
        %v513 = vld [vmem:[%s509 + $0xc] sm:$0xf]
        %v514 = vld [vmem:[%s509 + $0x10] sm:$0xf]
        %v515 = vld [vmem:[%s509 + $0x14] sm:$0xf]
        %v516 = vld [vmem:[%s509 + $0x18] sm:$0xf]
        %v517 = vld [vmem:[%s509 + $0x1c] sm:$0xf]
        %v518 = vld [vmem:[%s509 + $0x20] sm:$0xf]
        %v519 = vld [vmem:[%s509 + $0x24] sm:$0xf]
        %v520 = vld [vmem:[%s509 + $0x28] sm:$0xf]
        %v521 = vld [vmem:[%s509 + $0x2c] sm:$0xf]
        %v522 = vld [vmem:[%s509 + $0x30] sm:$0xf]
        %v523 = vld [vmem:[%s509 + $0x34] sm:$0xf]
        %v524 = vld [vmem:[%s509 + $0x38] sm:$0xf]
        %v525 = vld [vmem:[%s509 + $0x3c] sm:$0xf]
        %v527 = vunpack.c.l.b16 %v508
        %v528 = vpack.c.b16 %v365, %v527
        %vm529 = vcmask 1046528
        %v530 = vrot.slane %v528, 1
        %v531 = vrot.slane %v368, 1
        %v532 = vsel %vm529, %v530, %v531
        %v550 = vunpack.c.l.b16 %v510
        %v551 = vunpack.c.l.b16 %v511
        %v552 = vunpack.c.l.b16 %v512
        %v553 = vunpack.c.l.b16 %v513
        %v554 = vunpack.c.l.b16 %v514
        %v555 = vunpack.c.l.b16 %v515
        %v556 = vunpack.c.l.b16 %v516
        %v557 = vunpack.c.l.b16 %v517
        %v558 = vunpack.c.l.b16 %v518
        %v559 = vunpack.c.l.b16 %v519
        %v560 = vunpack.c.l.b16 %v520
        %v561 = vunpack.c.l.b16 %v521
        %v562 = vunpack.c.l.b16 %v522
        %v563 = vunpack.c.l.b16 %v523
        %v564 = vunpack.c.l.b16 %v524
        %v565 = vunpack.c.l.b16 %v525
        %v566 = vpack.c.b16 %v551, %v550
        %v567 = vpack.c.b16 %v553, %v552
        %v568 = vpack.c.b16 %v555, %v554
        %v569 = vpack.c.b16 %v557, %v556
        %v570 = vpack.c.b16 %v559, %v558
        %v571 = vpack.c.b16 %v561, %v560
        %v572 = vpack.c.b16 %v563, %v562
        %v573 = vpack.c.b16 %v565, %v564
        %582 = vmatpush.bf16.msra.mxu0 %v573
        %583 = vmatpush.bf16.msra.mxu0 %v572
        %584 = vmatpush.bf16.msra.mxu0 %v571
        %585 = vmatpush.bf16.msra.mxu0 %v570
        %586 = vmatpush.bf16.msra.mxu0 %v569
        %587 = vmatpush.bf16.msra.mxu0 %v568
        %588 = vmatpush.bf16.msra.mxu0 %v567
        %589 = vmatpush.bf16.msra.mxu0 %v566
        %590 = vmatmul.bf16.gmra.mxu0 %v532
        %v591 = vpop.f32.mrf.mxu0
        %v592 = vadd.f32 0.0, %v591
        %v593 = vpop.f32.mrf.mxu0
        %v594 = vadd.f32 0.0, %v593
        %595 = vdwg.mxu0
        %v596 = vadd.f32 %v504, %v592
        %v597 = vadd.f32 %v506, %v594
        %v598 = vld [vmem:[%s2] sm:$0x1]
        %v600 = vperm.slane %v598, 0
        %v602 = vadd.f32 %v596, %v600
        %v603 = vadd.f32 %v597, %v600
        %v604 = vmax.f32 %v602, 0.0
        %v605 = vmax.f32 %v603, 0.0
        %v606 = vpack.c.bf16 %v604, %v604
        %v607 = vpack.c.bf16 %v605, %v605
        %v609 = vshrl.u32 %v606, 16
        %v611 = vrot.slane %v609, 7
        %v612 = vshll.u32 %v606, 16
        %v614 = vor.u32 %v611, %v612
        %v615 = vrot.slane %v611, 4
        %v617 = vshrl.u32 %v607, 16
        %v619 = vrot.slane %v617, 7
        %v620 = vshll.u32 %v607, 16
        %v622 = vor.u32 %v619, %v620
        %v623 = vsel %vm295, %v615, %v622
        %v624 = vrot.slane %v619, 4
        %v628 = vsel %vm317, %v614, %v325
        %629 = vst [vmem:[#allocation2] sm:$0xf] %v628
        %630 = vst [vmem:[#allocation2 + $0x4] sm:$0xf] %v623
        %v631 = vld [vmem:[#allocation2 + $0x8] sm:$0x1]
        %v632 = vsel %vm283, %v624, %v631
        %633 = vst [vmem:[#allocation2 + $0x8] sm:$0x1] %v632
        %v634 = vld [vmem:[#allocation2] sm:$0xf]
        %v635 = vld [vmem:[#allocation2 + $0x4] sm:$0xf]
        %v636 = vld [vmem:[#allocation8] sm:$0xf]
        %v637 = vld [vmem:[#allocation8 + $0x4] sm:$0xf]
        %v638 = vld [vmem:[#allocation8 + $0x8] sm:$0xf]
        %v639 = vld [vmem:[#allocation8 + $0xc] sm:$0xf]
        %v640 = vld [vmem:[#allocation8 + $0x10] sm:$0xf]
        %v641 = vld [vmem:[#allocation8 + $0x14] sm:$0xf]
        %v642 = vld [vmem:[#allocation8 + $0x18] sm:$0xf]
        %v643 = vld [vmem:[#allocation8 + $0x1c] sm:$0xf]
        %v644 = vld [vmem:[#allocation8 + $0x20] sm:$0xf]
        %v645 = vld [vmem:[#allocation8 + $0x24] sm:$0xf]
        %v646 = vld [vmem:[#allocation8 + $0x28] sm:$0xf]
        %v647 = vld [vmem:[#allocation8 + $0x2c] sm:$0xf]
        %v648 = vld [vmem:[#allocation8 + $0x30] sm:$0xf]
        %v649 = vld [vmem:[#allocation8 + $0x34] sm:$0xf]
        %v650 = vld [vmem:[#allocation8 + $0x38] sm:$0xf]
        %v651 = vld [vmem:[#allocation8 + $0x3c] sm:$0xf]
        %v652 = vld [vmem:[#allocation2 + $0x8] sm:$0x1]
        %s653 = scalar_lea.vmem [#allocation8], 64
        %v654 = vld [vmem:[%s653] sm:$0xf]
        %v655 = vld [vmem:[%s653 + $0x4] sm:$0xf]
        %v656 = vld [vmem:[%s653 + $0x8] sm:$0xf]
        %v657 = vld [vmem:[%s653 + $0xc] sm:$0xf]
        %v658 = vld [vmem:[%s653 + $0x10] sm:$0xf]
        %v659 = vld [vmem:[%s653 + $0x14] sm:$0xf]
        %v660 = vld [vmem:[%s653 + $0x18] sm:$0xf]
        %v661 = vld [vmem:[%s653 + $0x1c] sm:$0xf]
        %v662 = vld [vmem:[%s653 + $0x20] sm:$0xf]
        %v663 = vld [vmem:[%s653 + $0x24] sm:$0xf]
        %v664 = vld [vmem:[%s653 + $0x28] sm:$0xf]
        %v665 = vld [vmem:[%s653 + $0x2c] sm:$0xf]
        %v666 = vld [vmem:[%s653 + $0x30] sm:$0xf]
        %v667 = vld [vmem:[%s653 + $0x34] sm:$0xf]
        %v668 = vld [vmem:[%s653 + $0x38] sm:$0xf]
        %v669 = vld [vmem:[%s653 + $0x3c] sm:$0xf]
        %v673 = vunpack.c.l.b16 %v634
        %v674 = vunpack.c.l.b16 %v635
        %v675 = vunpack.c.l.b16 %v652
        %v676 = vpack.c.b16 %v674, %v673
        %v677 = vpack.c.b16 %v675, %v675
        %v679 = vshrl.u32 %v676, 16
        %v681 = vshll.u32 %v676, 16
        %v683 = vrot.slane %v681, 1
        %v684 = vor.u32 %v679, %v683
        %v686 = vshll.u32 %v677, 16
        %v688 = vrot.slane %v686, 1
        %v689 = vsel %vm369, %v684, %v688
        %v707 = vunpack.c.l.b16 %v654
        %v708 = vunpack.c.l.b16 %v655
        %v709 = vunpack.c.l.b16 %v656
        %v710 = vunpack.c.l.b16 %v657
        %v711 = vunpack.c.l.b16 %v658
        %v712 = vunpack.c.l.b16 %v659
        %v713 = vunpack.c.l.b16 %v660
        %v714 = vunpack.c.l.b16 %v661
        %v715 = vunpack.c.l.b16 %v662
        %v716 = vunpack.c.l.b16 %v663
        %v717 = vunpack.c.l.b16 %v664
        %v718 = vunpack.c.l.b16 %v665
        %v719 = vunpack.c.l.b16 %v666
        %v720 = vunpack.c.l.b16 %v667
        %v721 = vunpack.c.l.b16 %v668
        %v722 = vunpack.c.l.b16 %v669
        %v723 = vpack.c.b16 %v708, %v707
        %v724 = vpack.c.b16 %v710, %v709
        %v725 = vpack.c.b16 %v712, %v711
        %v726 = vpack.c.b16 %v714, %v713
        %v727 = vpack.c.b16 %v716, %v715
        %v728 = vpack.c.b16 %v718, %v717
        %v729 = vpack.c.b16 %v720, %v719
        %v730 = vpack.c.b16 %v722, %v721
        %739 = vmatpush.bf16.msra.mxu0 %v730
        %740 = vmatpush.bf16.msra.mxu0 %v729
        %741 = vmatpush.bf16.msra.mxu0 %v728
        %742 = vmatpush.bf16.msra.mxu0 %v727
        %743 = vmatpush.bf16.msra.mxu0 %v726
        %744 = vmatpush.bf16.msra.mxu0 %v725
        %745 = vmatpush.bf16.msra.mxu0 %v724
        %746 = vmatpush.bf16.msra.mxu0 %v723
        %747 = vmatmul.bf16.gmra.mxu0 %v689
        %v748 = vpop.f32.mrf.mxu0
        %v749 = vadd.f32 0.0, %v748
        %v750 = vpop.f32.mrf.mxu0
        %v751 = vadd.f32 0.0, %v750
        %752 = vdwg.mxu0
        %v770 = vunpack.c.l.b16 %v636
        %v771 = vunpack.c.l.b16 %v637
        %v772 = vunpack.c.l.b16 %v638
        %v773 = vunpack.c.l.b16 %v639
        %v774 = vunpack.c.l.b16 %v640
        %v775 = vunpack.c.l.b16 %v641
        %v776 = vunpack.c.l.b16 %v642
        %v777 = vunpack.c.l.b16 %v643
        %v778 = vunpack.c.l.b16 %v644
        %v779 = vunpack.c.l.b16 %v645
        %v780 = vunpack.c.l.b16 %v646
        %v781 = vunpack.c.l.b16 %v647
        %v782 = vunpack.c.l.b16 %v648
        %v783 = vunpack.c.l.b16 %v649
        %v784 = vunpack.c.l.b16 %v650
        %v785 = vunpack.c.l.b16 %v651
        %v786 = vpack.c.b16 %v771, %v770
        %v787 = vpack.c.b16 %v773, %v772
        %v788 = vpack.c.b16 %v775, %v774
        %v789 = vpack.c.b16 %v777, %v776
        %v790 = vpack.c.b16 %v779, %v778
        %v791 = vpack.c.b16 %v781, %v780
        %v792 = vpack.c.b16 %v783, %v782
        %v793 = vpack.c.b16 %v785, %v784
        %802 = vmatpush.bf16.msra.mxu0 %v793
        %803 = vmatpush.bf16.msra.mxu0 %v792
        %804 = vmatpush.bf16.msra.mxu0 %v791
        %805 = vmatpush.bf16.msra.mxu0 %v790
        %806 = vmatpush.bf16.msra.mxu0 %v789
        %807 = vmatpush.bf16.msra.mxu0 %v788
        %808 = vmatpush.bf16.msra.mxu0 %v787
        %809 = vmatpush.bf16.msra.mxu0 %v786
        %810 = vmatmul.bf16.gmra.mxu0 %v676
        %v811 = vpop.f32.mrf.mxu0
        %v812 = vadd.f32 %v749, %v811
        %v813 = vpop.f32.mrf.mxu0
        %v814 = vadd.f32 %v751, %v813
        %815 = vdwg.mxu0
        %v816 = vld [vmem:[#allocation2] sm:$0xe]
        %s817 = scalar_lea.vmem [#allocation8], 128
        %v818 = vld [vmem:[%s817] sm:$0xf]
        %v819 = vld [vmem:[%s817 + $0x4] sm:$0xf]
        %v820 = vld [vmem:[%s817 + $0x8] sm:$0xf]
        %v821 = vld [vmem:[%s817 + $0xc] sm:$0xf]
        %v822 = vld [vmem:[%s817 + $0x10] sm:$0xf]
        %v823 = vld [vmem:[%s817 + $0x14] sm:$0xf]
        %v824 = vld [vmem:[%s817 + $0x18] sm:$0xf]
        %v825 = vld [vmem:[%s817 + $0x1c] sm:$0xf]
        %v826 = vld [vmem:[%s817 + $0x20] sm:$0xf]
        %v827 = vld [vmem:[%s817 + $0x24] sm:$0xf]
        %v828 = vld [vmem:[%s817 + $0x28] sm:$0xf]
        %v829 = vld [vmem:[%s817 + $0x2c] sm:$0xf]
        %v830 = vld [vmem:[%s817 + $0x30] sm:$0xf]
        %v831 = vld [vmem:[%s817 + $0x34] sm:$0xf]
        %v832 = vld [vmem:[%s817 + $0x38] sm:$0xf]
        %v833 = vld [vmem:[%s817 + $0x3c] sm:$0xf]
        %v835 = vunpack.c.l.b16 %v816
        %v836 = vpack.c.b16 %v674, %v835
        %v837 = vrot.slane %v836, 1
        %v838 = vrot.slane %v677, 1
        %v839 = vsel %vm529, %v837, %v838
        %v857 = vunpack.c.l.b16 %v818
        %v858 = vunpack.c.l.b16 %v819
        %v859 = vunpack.c.l.b16 %v820
        %v860 = vunpack.c.l.b16 %v821
        %v861 = vunpack.c.l.b16 %v822
        %v862 = vunpack.c.l.b16 %v823
        %v863 = vunpack.c.l.b16 %v824
        %v864 = vunpack.c.l.b16 %v825
        %v865 = vunpack.c.l.b16 %v826
        %v866 = vunpack.c.l.b16 %v827
        %v867 = vunpack.c.l.b16 %v828
        %v868 = vunpack.c.l.b16 %v829
        %v869 = vunpack.c.l.b16 %v830
        %v870 = vunpack.c.l.b16 %v831
        %v871 = vunpack.c.l.b16 %v832
        %v872 = vunpack.c.l.b16 %v833
        %v873 = vpack.c.b16 %v858, %v857
        %v874 = vpack.c.b16 %v860, %v859
        %v875 = vpack.c.b16 %v862, %v861
        %v876 = vpack.c.b16 %v864, %v863
        %v877 = vpack.c.b16 %v866, %v865
        %v878 = vpack.c.b16 %v868, %v867
        %v879 = vpack.c.b16 %v870, %v869
        %v880 = vpack.c.b16 %v872, %v871
        %889 = vmatpush.bf16.msra.mxu0 %v880
        %890 = vmatpush.bf16.msra.mxu0 %v879
        %891 = vmatpush.bf16.msra.mxu0 %v878
        %892 = vmatpush.bf16.msra.mxu0 %v877
        %893 = vmatpush.bf16.msra.mxu0 %v876
        %894 = vmatpush.bf16.msra.mxu0 %v875
        %895 = vmatpush.bf16.msra.mxu0 %v874
        %896 = vmatpush.bf16.msra.mxu0 %v873
        %897 = vmatmul.bf16.gmra.mxu0 %v839
        %v898 = vpop.f32.mrf.mxu0
        %v899 = vadd.f32 0.0, %v898
        %v900 = vpop.f32.mrf.mxu0
        %v901 = vadd.f32 0.0, %v900
        %902 = vdwg.mxu0
        %v903 = vadd.f32 %v812, %v899
        %v904 = vadd.f32 %v814, %v901
        %v905 = vld [vmem:[%s4] sm:$0x1]
        %v907 = vperm.slane %v905, 0
        %v909 = vadd.f32 %v903, %v907
        %v910 = vadd.f32 %v904, %v907
        %v911 = vadd.f32 %v909, %v279
        %v912 = vadd.f32 %v910, %v280
        %v913 = vmax.f32 %v911, 0.0
        %v914 = vmax.f32 %v912, 0.0
        %915 = vst [vmem:[%s277] sm:$0xff] %v913
        %916 = vst [vmem:[%s277 + $0x8] sm:$0xff] %v914
        %s917 = sand.u32 %s141, 1
        %s918 = scalar_lea.sflag [#allocation5], %s917
        %s919 = sand.u32 %s141, 1
        %s920 = smul.addr %s919, 16
        %s921 = scalar_lea.vmem [#allocation9], %s920
        // Predicated region
        $region53: #{tpu_custom_call.1} parent=39 // pred_check
          %p922 = pneg %p151
        $region54: #{tpu_custom_call.1} parent=39 // pred_check_branch
          %924 = sbr.rel (%p922) target = $region56
        $region55: #{tpu_custom_call.1} parent=39 // pred_region
          %926 = vsyncadd %s918, 0
          %s927 = smul.addr %s23, 2
          %s928 = smul.addr %s927, 8
          %s929 = scalar_lea.hbm %s5, %s928
          %s930 = sshll.u32 %s921, 4
          %s931 = int_to_ptr.vmem [resolvable:$true] %s930
          %s932 = sshll.u32 %s929, 4
          %s933 = int_to_ptr.hbm [resolvable:$true] %s932
          %938 = dma.vmem_to_hbm [thread:$0]  %s931, 256, %s933, %s918, 128, 128, 8
        $region56: #{tpu_custom_call.1} parent=39 // pred_fallthru
          _
      $region40: #{tpu_custom_call.1} parent=5 // pred_fallthru
        _
      %p939 = scmp.le.s32.totalorder 2, %s18
      // Predicated region
      $region57: #{tpu_custom_call.1} parent=5 // pred_check
        %p940 = pneg %p939
      $region58: #{tpu_custom_call.1} parent=5 // pred_check_branch
        %942 = sbr.rel (%p940) target = $region60
      $region59: #{tpu_custom_call.1} parent=5 // pred_region
        %s943 = ssub.s32 %s18, 2
        // Predicated region
        $region61: #{tpu_custom_call.1} parent=59 // pred_check
          %p944 = pneg %p157
        $region62: #{tpu_custom_call.1} parent=59 // pred_check_branch
          %946 = sbr.rel (%p944) target = $region64
        $region63: #{tpu_custom_call.1} parent=59 // pred_region
          %s947 = sand.u32 %s142, 1
          %s948 = scalar_lea.sflag [#allocation5], %s947
          %s949 = sand.u32 %s142, 1
          %s950 = smul.addr %s949, 16
          %s951 = scalar_lea.vmem [#allocation9], %s950
          %953 = dma.done %s948, 256
        $region64: #{tpu_custom_call.1} parent=59 // pred_fallthru
          _
      $region60: #{tpu_custom_call.1} parent=5 // pred_fallthru
        _
    $region6: #{tpu_custom_call.1} parent=1 // loop_footer
      %s22 = sadd.s32 1, %s18
    $region7: #{tpu_custom_call.1} parent=1 // loop_footer_branch
      %17 = sbr.rel target = $region3
    $region8: #{tpu_custom_call.1} parent=1 // loop_exit
      _
    %954 = vsyncpa [#allocation4], 1
    %s955 = scalar_lea.sflag [#allocation4], 1
    %956 = vsyncpa %s955, 1
    %957 = vsyncpa [#allocation7], 1
    %958 = vsyncpa [#allocation5], 1
    %s959 = scalar_lea.sflag [#allocation5], 1
    %960 = vsyncpa %s959, 1

</llo_original>
